<compile_context>
chip_gen: v7x
topology: tpu7x:2x2x1
jax: 0.10.0
libtpu: 0.0.40
codegen_flags: <defaults>
</compile_context>

<pallas_src>
import functools
import math
import warnings

import jax
import jax.numpy as jnp
from jax import lax
from jax.experimental import pallas as pl
from jax.experimental.pallas import tpu as pltpu


_INV_SQRT2 = 1.0 / math.sqrt(2.0)
_SQRT_2_OVER_PI = math.sqrt(2.0 / math.pi)

_MIN_GRID_STEPS = 4                      # >=4 steps when N permits: v7x 2-TC sharding + DMA overlap
_VMEM_HEADROOM = 12 * 1024 * 1024        # leave headroom below physical VMEM
_VMEM_SOFT_CAP = 100 * 1024 * 1024       # never request more than ~100 MiB scoped VMEM
_SCRATCH_MARGIN = 4 * 1024 * 1024        # compiler scratch / misc allocations

# None = unknown, True/False once probed (so the fallback warning fires at most once).
_SINGLE_BUFFER_WEIGHTS_OK = None


def _round_up(v, m):
    return ((v + m - 1) // m) * m


def _sublane_multiple(dtype):
    itemsize = jnp.dtype(dtype).itemsize
    if itemsize >= 4:
        return 8
    if itemsize == 2:
        return 16
    return 32


def _vmem_capacity_bytes():
    try:
        return int(pltpu.get_tpu_info().vmem_capacity_bytes)
    except Exception:
        return 128 * 1024 * 1024   # conservative default (v5e/v6e)


# --------------------------------------------------------------------------
# Kernel body
# --------------------------------------------------------------------------
def _region_feat_regression_kernel(
    x_ref,       # (tm, H)   input row tile (MXU dtype, e.g. bf16)
    w1t_ref,     # (H, H)    pre-transposed nn.Linear weight (in, out), MXU dtype
    b1_ref,      # (1, H)    nn.Linear bias, f32
    gamma_ref,   # (1, H)    LayerNorm weight, f32
    beta_ref,    # (1, H)    LayerNorm bias, f32
    wimg_ref,    # (H, Fp)   img_linear_weight (lane-padded), MXU dtype
    bout_ref,    # (1, Fp)   output bias (lane-padded), f32
    out_ref,     # (tm, Fp)
    *,
    approx_gelu,
):
    # ---- Linear(hidden, hidden): x @ W1.T + b1 (MXU, f32 accumulation) ----
    h = jnp.dot(x_ref[...], w1t_ref[...], preferred_element_type=jnp.float32)
    h = h + b1_ref[...]                      # biases are pre-cast to f32 in the wrapper

    # ---- GELU (exact erf form as in UNITER; tanh approx optional) ----
    if approx_gelu:
        h = 0.5 * h * (1.0 + jnp.tanh(_SQRT_2_OVER_PI * (h + 0.044715 * h * h * h)))
    else:
        h = h * 0.5 * (1.0 + lax.erf(h * _INV_SQRT2))

    # ---- LayerNorm(hidden, eps=1e-12) in f32 ----
    mean = jnp.mean(h, axis=-1, keepdims=True)
    centered = h - mean
    var = jnp.mean(centered * centered, axis=-1, keepdims=True)
    h = centered * lax.rsqrt(var + 1e-12)
    h = h * gamma_ref[...] + beta_ref[...]

    # ---- F.linear(h, W_img.t(), b_out) == h @ W_img + b_out ----
    out = jnp.dot(h.astype(wimg_ref.dtype), wimg_ref[...],
                  preferred_element_type=jnp.float32)
    out = out + bout_ref[...]
    out_ref[...] = out.astype(out_ref.dtype)


# --------------------------------------------------------------------------
# One-time parameter preparation (hoisted layout work: transpose, lane pad, casts)
# --------------------------------------------------------------------------
def prepare_region_feature_params(w1, b1, gamma, beta, w_img, b_out, *, mxu_dtype=None):
    """w1: (H, H) torch nn.Linear (out, in) layout; w_img: (H, feat_dim)."""
    H = w1.shape[0]
    F_dim = w_img.shape[1]

    if mxu_dtype is None:
        # No TPU generation has a native f32 MXU path -> feed bf16 by default.
        mxu_dtype = jnp.bfloat16 if jnp.dtype(w1.dtype) == jnp.float32 else jnp.dtype(w1.dtype)
    mxu_dtype = jnp.dtype(mxu_dtype)

    F_pad = _round_up(max(F_dim, 128), 128)          # lane-dense output stores
    w1t = w1.T.astype(mxu_dtype)                     # hoisted transpose (no in-kernel .T)
    w_img_p, b_out_p = w_img, b_out
    if F_pad != F_dim:
        w_img_p = jnp.pad(w_img, ((0, 0), (0, F_pad - F_dim)))
        b_out_p = jnp.pad(b_out, (0, F_pad - F_dim))
    w_img_p = w_img_p.astype(mxu_dtype)

    return dict(
        w1t=w1t,
        b1=b1.astype(jnp.float32).reshape(1, H),
        gamma=gamma.astype(jnp.float32).reshape(1, H),
        beta=beta.astype(jnp.float32).reshape(1, H),
        w_img=w_img_p,
        b_out=b_out_p.astype(jnp.float32).reshape(1, F_pad),
        hidden=H,
        feat_dim=F_dim,
        f_pad=F_pad,
        mxu_dtype=mxu_dtype,
    )


# --------------------------------------------------------------------------
# Forward pass on prepared params
# --------------------------------------------------------------------------
def apply_region_feature_regression(x, params, *, tm=None, out_dtype=None,
                                    approx_gelu=False):
    """x: (..., H); returns (..., feat_dim)."""
    global _SINGLE_BUFFER_WEIGHTS_OK

    H = params["hidden"]
    F_dim, F_pad = params["feat_dim"], params["f_pad"]
    mxu_dtype = params["mxu_dtype"]
    assert x.shape[-1] == H

    lead = x.shape[:-1]
    x2 = x.reshape(-1, H)
    N = x2.shape[0]
    if out_dtype is None:
        out_dtype = x.dtype

    x_k = x2 if jnp.dtype(x2.dtype) == mxu_dtype else x2.astype(mxu_dtype)

    # --- generation-aware tiling ---
    vmem_cap = _vmem_capacity_bytes()
    if tm is None:
        tm = 256 if vmem_cap <= 64 * 1024 * 1024 else 512   # v7x : v5e/v6e

    sub = _sublane_multiple(mxu_dtype)                       # dtype-aware sublane multiple
    N_sub = _round_up(max(N, 1), sub)
    tm_req = max(sub, _round_up(tm, sub))
    # Keep >= _MIN_GRID_STEPS grid steps when the problem allows it.
    tm_cap = max(sub, _round_up((N_sub + _MIN_GRID_STEPS - 1) // _MIN_GRID_STEPS, sub))
    tm_eff = min(tm_req, tm_cap)
    N_pad = _round_up(N_sub, tm_eff)
    if N_pad != N:
        x_k = jnp.pad(x_k, ((0, N_pad - N), (0, 0)))         # ragged tail via zero pad

    # --- VMEM budget: single-buffered weights + 2x streamed tiles + f32 intermediates ---
    isz = lambda d: jnp.dtype(d).itemsize
    resident = (params["w1t"].size * isz(params["w1t"].dtype)
                + params["w_img"].size * isz(params["w_img"].dtype)
                + (3 * H + F_pad) * 4)                        # f32 bias/LN vectors
    streaming = 2 * (tm_eff * H * isz(mxu_dtype) + tm_eff * F_pad * isz(out_dtype))
    intermediates = tm_eff * H * 4 + tm_eff * F_pad * 4       # f32 h + pre-cast out
    vmem_ceiling = min(vmem_cap - _VMEM_HEADROOM, _VMEM_SOFT_CAP)
    vmem_limit = int(min(max(resident + streaming + intermediates + _SCRATCH_MARGIN,
                             32 * 1024 * 1024),
                         vmem_ceiling))

    grid = (N_pad // tm_eff,)
    kernel = functools.partial(_region_feat_regression_kernel, approx_gelu=approx_gelu)

    def _run(single_buffer_weights):
        if single_buffer_weights:
            # Resident operands (constant index_map) -> single-buffered in VMEM.
            def resident_spec(shape):
                return pl.BlockSpec(shape, lambda i: (0, 0),
                                    pipeline_mode=pl.Buffered(1))
        else:
            def resident_spec(shape):
                return pl.BlockSpec(shape, lambda i: (0, 0))

        return pl.pallas_call(
            kernel,
            out_shape=jax.ShapeDtypeStruct((N_pad, F_pad), out_dtype),
            grid_spec=pltpu.PrefetchScalarGridSpec(
                num_scalar_prefetch=0,
                grid=grid,
                in_specs=[
                    pl.BlockSpec((tm_eff, H), lambda i: (i, 0)),  # x (streamed)
                    resident_spec((H, H)),                        # W1^T
                    resident_spec((1, H)),                        # b1 (f32)
                    resident_spec((1, H)),                        # gamma (f32)
                    resident_spec((1, H)),                        # beta (f32)
                    resident_spec((H, F_pad)),                    # W_img
                    resident_spec((1, F_pad)),                    # b_out (f32)
                ],
                out_specs=pl.BlockSpec((tm_eff, F_pad), lambda i: (i, 0)),
            ),
            compiler_params=pltpu.CompilerParams(
                dimension_semantics=("parallel",),
                vmem_limit_bytes=vmem_limit),
        )(x_k, params["w1t"], params["b1"], params["gamma"], params["beta"],
          params["w_img"], params["b_out"])

    if _SINGLE_BUFFER_WEIGHTS_OK is False:
        out = _run(False)
    else:
        try:
            out = _run(True)
            _SINGLE_BUFFER_WEIGHTS_OK = True
        # Deliberately broad for cross-version robustness of the script, but
        # NEVER silent: the fallback (2x resident-weight VMEM, notable on v7x)
        # is reported once with the failing exception type/message.
        except Exception as e:  # noqa: BLE001
            _SINGLE_BUFFER_WEIGHTS_OK = False
            warnings.warn(
                "RegionFeatureRegression: Buffered(1) single-buffering of resident "
                f"weights unavailable ({type(e).__name__}: {e}); falling back to "
                "double-buffered resident weights.")
            out = _run(False)

    return out[:N, :F_dim].reshape(*lead, F_dim)


def region_feature_regression(x, w1, b1, gamma, beta, w_img, b_out, *,
                              tm=None, out_dtype=None, mxu_dtype=None,
                              approx_gelu=False):
    """Convenience wrapper: prep params + apply. For repeated calls with fixed
    weights, call prepare_region_feature_params() once and reuse."""
    params = prepare_region_feature_params(w1, b1, gamma, beta, w_img, b_out,
                                           mxu_dtype=mxu_dtype)
    return apply_region_feature_regression(x, params, tm=tm, out_dtype=out_dtype,
                                           approx_gelu=approx_gelu)


# --------------------------------------------------------------------------
# Reference + test
# --------------------------------------------------------------------------
def _reference(x, w1, b1, gamma, beta, w_img, b_out):
    h = x @ w1.T + b1
    h = h * 0.5 * (1.0 + lax.erf(h / jnp.sqrt(2.0)))
    mean = jnp.mean(h, axis=-1, keepdims=True)
    var = jnp.mean((h - mean) ** 2, axis=-1, keepdims=True)
    h = (h - mean) * lax.rsqrt(var + 1e-12)
    h = h * gamma + beta
    return h @ w_img + b_out


if __name__ == "__main__":
    key = jax.random.PRNGKey(0)
    batch, seq = 2, 4
    hidden_size, feat_dim = 32, 16

    keys = jax.random.split(key, 7)
    x = jax.random.normal(keys[0], (batch, seq, hidden_size), dtype=jnp.float32)

    # Deterministic synthetic parameters (shapes from the module's __init__).
    w1 = 0.1 * jax.random.normal(keys[1], (hidden_size, hidden_size), jnp.float32)
    b1 = 0.05 * jax.random.normal(keys[2], (hidden_size,), jnp.float32)
    gamma = 1.0 + 0.01 * jax.random.normal(keys[3], (hidden_size,), jnp.float32)
    beta = 0.01 * jax.random.normal(keys[4], (hidden_size,), jnp.float32)
    # img_linear_weight of nn.Linear(feat_dim -> hidden) has shape (hidden, feat_dim);
    # the module uses its transpose, i.e. out = h @ w_img + b_out.
    w_img = 0.1 * jax.random.normal(keys[5], (hidden_size, feat_dim), jnp.float32)
    b_out = jnp.zeros((feat_dim,), jnp.float32)   # nn.Parameter(torch.zeros(feat_dim))

    ref = _reference(x.reshape(-1, hidden_size), w1, b1, gamma, beta, w_img, b_out)
    ref = ref.reshape(batch, seq, feat_dim)

    # 1) Exact-f32 MXU path: must match the torch-equivalent reference tightly.
    params_f32 = prepare_region_feature_params(w1, b1, gamma, beta, w_img, b_out,
                                               mxu_dtype=jnp.float32)
    out_f32 = apply_region_feature_regression(x, params_f32)
    out_f32 = jax.block_until_ready(out_f32)
    assert out_f32.shape == (batch, seq, feat_dim)
    assert jnp.allclose(out_f32, ref, atol=1e-5, rtol=1e-5), "f32 mismatch vs reference"

    # 2) Default bf16-MXU path (f32 accumulation); mixed-precision tolerance.
    out_bf16 = region_feature_regression(x, w1, b1, gamma, beta, w_img, b_out)
    out_bf16 = jax.block_until_ready(out_bf16)
    assert out_bf16.shape == (batch, seq, feat_dim)
    assert jnp.allclose(out_bf16, ref, atol=5e-2, rtol=5e-2), "bf16 mismatch vs reference"

    # 3) Multi-step grid (ragged N, several row tiles) on the default path.
    x_big = jax.random.normal(keys[6], (40, hidden_size), dtype=jnp.float32)
    ref_big = _reference(x_big, w1, b1, gamma, beta, w_img, b_out)
    out_big = region_feature_regression(x_big, w1, b1, gamma, beta, w_img, b_out)
    out_big = jax.block_until_ready(out_big)
    assert out_big.shape == (40, feat_dim)
    assert jnp.allclose(out_big, ref_big, atol=5e-2, rtol=5e-2), "ragged-N mismatch"

    print("KERNEL_OK")
</pallas_src>

<mosaic_0001>
module attributes {stable_mosaic.version = 11 : i64} {
  func.func @_region_feat_regression_kernel(%arg0: i32, %arg1: memref<8x32xf32, #tpu.memory_space<vmem>>, %arg2: memref<32x32xf32, #tpu.memory_space<vmem>>, %arg3: memref<1x32xf32, #tpu.memory_space<vmem>>, %arg4: memref<1x32xf32, #tpu.memory_space<vmem>>, %arg5: memref<1x32xf32, #tpu.memory_space<vmem>>, %arg6: memref<32x128xf32, #tpu.memory_space<vmem>>, %arg7: memref<1x128xf32, #tpu.memory_space<vmem>>, %arg8: memref<8x128xf32, #tpu.memory_space<vmem>>) attributes {dimension_semantics = [#tpu.dimension_semantics<parallel>], iteration_bounds = array<i64: 1>, scalar_prefetch = 0 : i64, scratch_operands = 0 : i64, tpu.core_type = #tpu.core_type<tc>, window_params = [{transform_indices = @transform_0, window_bounds = array<i64: 8, 32>}, {pipeline_mode = #tpu.pipeline_mode<synchronous>, transform_indices = @transform_1, window_bounds = array<i64: 32, 32>}, {pipeline_mode = #tpu.pipeline_mode<synchronous>, transform_indices = @transform_2, window_bounds = array<i64: 1, 32>}, {pipeline_mode = #tpu.pipeline_mode<synchronous>, transform_indices = @transform_3, window_bounds = array<i64: 1, 32>}, {pipeline_mode = #tpu.pipeline_mode<synchronous>, transform_indices = @transform_4, window_bounds = array<i64: 1, 32>}, {pipeline_mode = #tpu.pipeline_mode<synchronous>, transform_indices = @transform_5, window_bounds = array<i64: 32, 128>}, {pipeline_mode = #tpu.pipeline_mode<synchronous>, transform_indices = @transform_6, window_bounds = array<i64: 1, 128>}, {transform_indices = @transform_7, window_bounds = array<i64: 8, 128>}]} {
    %c0 = arith.constant 0 : index
    %c0_0 = arith.constant 0 : index
    %0 = vector.load %arg1[%c0, %c0_0] : memref<8x32xf32, #tpu.memory_space<vmem>>, vector<8x32xf32>
    %c0_1 = arith.constant 0 : index
    %c0_2 = arith.constant 0 : index
    %1 = vector.load %arg2[%c0_1, %c0_2] : memref<32x32xf32, #tpu.memory_space<vmem>>, vector<32x32xf32>
    %cst = arith.constant dense<0.000000e+00> : vector<8x32xf32>
    %2 = tpu.matmul %0, %1, %cst {dimension_numbers = #tpu.dot_dimension_numbers<[1], [0], [0], [1], [0, 0, 1, 1], [], []>} : vector<8x32xf32>, vector<32x32xf32>, vector<8x32xf32> -> vector<8x32xf32>
    %c0_3 = arith.constant 0 : index
    %c0_4 = arith.constant 0 : index
    %3 = vector.load %arg3[%c0_3, %c0_4] : memref<1x32xf32, #tpu.memory_space<vmem>>, vector<1x32xf32>
    %4 = vector.broadcast %3 : vector<1x32xf32> to vector<8x32xf32>
    %5 = arith.addf %2, %4 : vector<8x32xf32>
    %cst_5 = arith.constant 5.000000e-01 : f32
    %6 = vector.broadcast %cst_5 : f32 to vector<8x32xf32>
    %7 = arith.mulf %5, %6 : vector<8x32xf32>
    %cst_6 = arith.constant 0.707106769 : f32
    %8 = vector.broadcast %cst_6 : f32 to vector<8x32xf32>
    %9 = arith.mulf %5, %8 : vector<8x32xf32>
    %10 = math.erf %9 : vector<8x32xf32>
    %cst_7 = arith.constant 1.000000e+00 : f32
    %11 = vector.broadcast %cst_7 : f32 to vector<8x32xf32>
    %12 = arith.addf %11, %10 : vector<8x32xf32>
    %13 = arith.mulf %7, %12 : vector<8x32xf32>
    %cst_8 = arith.constant dense<0.000000e+00> : vector<8xf32>
    %14 = vector.multi_reduction <add>, %13, %cst_8 [1] : vector<8x32xf32> to vector<8xf32>
    %15 = vector.shape_cast %14 : vector<8xf32> to vector<8x1xf32>
    %cst_9 = arith.constant 3.200000e+01 : f32
    %16 = vector.broadcast %cst_9 : f32 to vector<8x1xf32>
    %17 = arith.divf %15, %16 : vector<8x1xf32>
    %18 = vector.broadcast %17 : vector<8x1xf32> to vector<8x32xf32>
    %19 = arith.subf %13, %18 : vector<8x32xf32>
    %20 = arith.mulf %19, %19 : vector<8x32xf32>
    %cst_10 = arith.constant dense<0.000000e+00> : vector<8xf32>
    %21 = vector.multi_reduction <add>, %20, %cst_10 [1] : vector<8x32xf32> to vector<8xf32>
    %22 = vector.shape_cast %21 : vector<8xf32> to vector<8x1xf32>
    %cst_11 = arith.constant 3.200000e+01 : f32
    %23 = vector.broadcast %cst_11 : f32 to vector<8x1xf32>
    %24 = arith.divf %22, %23 : vector<8x1xf32>
    %cst_12 = arith.constant 9.99999996E-13 : f32
    %25 = vector.broadcast %cst_12 : f32 to vector<8x1xf32>
    %26 = arith.addf %24, %25 : vector<8x1xf32>
    %27 = math.rsqrt %26 : vector<8x1xf32>
    %28 = vector.broadcast %27 : vector<8x1xf32> to vector<8x32xf32>
    %29 = arith.mulf %19, %28 : vector<8x32xf32>
    %c0_13 = arith.constant 0 : index
    %c0_14 = arith.constant 0 : index
    %30 = vector.load %arg4[%c0_13, %c0_14] : memref<1x32xf32, #tpu.memory_space<vmem>>, vector<1x32xf32>
    %31 = vector.broadcast %30 : vector<1x32xf32> to vector<8x32xf32>
    %32 = arith.mulf %29, %31 : vector<8x32xf32>
    %c0_15 = arith.constant 0 : index
    %c0_16 = arith.constant 0 : index
    %33 = vector.load %arg5[%c0_15, %c0_16] : memref<1x32xf32, #tpu.memory_space<vmem>>, vector<1x32xf32>
    %34 = vector.broadcast %33 : vector<1x32xf32> to vector<8x32xf32>
    %35 = arith.addf %32, %34 : vector<8x32xf32>
    %c0_17 = arith.constant 0 : index
    %c0_18 = arith.constant 0 : index
    %36 = vector.load %arg6[%c0_17, %c0_18] : memref<32x128xf32, #tpu.memory_space<vmem>>, vector<32x128xf32>
    %cst_19 = arith.constant dense<0.000000e+00> : vector<8x128xf32>
    %37 = tpu.matmul %35, %36, %cst_19 {dimension_numbers = #tpu.dot_dimension_numbers<[1], [0], [0], [1], [0, 0, 1, 1], [], []>} : vector<8x32xf32>, vector<32x128xf32>, vector<8x128xf32> -> vector<8x128xf32>
    %c0_20 = arith.constant 0 : index
    %c0_21 = arith.constant 0 : index
    %38 = vector.load %arg7[%c0_20, %c0_21] : memref<1x128xf32, #tpu.memory_space<vmem>>, vector<1x128xf32>
    %39 = vector.broadcast %38 : vector<1x128xf32> to vector<8x128xf32>
    %40 = arith.addf %37, %39 : vector<8x128xf32>
    %c0_22 = arith.constant 0 : index
    %c0_23 = arith.constant 0 : index
    %41 = vector.load %arg8[%c0_22, %c0_23] : memref<8x128xf32, #tpu.memory_space<vmem>>, vector<8x128xf32>
    tpu.vector_store %arg8[%c0_22, %c0_23], %40 {strides = array<i32>} : memref<8x128xf32, #tpu.memory_space<vmem>>, vector<8x128xf32>,
    return
  }
  func.func @transform_0(%arg0: i32) -> (i32, i32) {
    %c0_i32 = arith.constant 0 : i32
    %c0_i32_0 = arith.constant 0 : i32
    return %arg0, %c0_i32 : i32, i32
  }
  func.func @transform_1(%arg0: i32) -> (i32, i32) {
    %c0_i32 = arith.constant 0 : i32
    %c0_i32_0 = arith.constant 0 : i32
    %c0_i32_1 = arith.constant 0 : i32
    return %c0_i32, %c0_i32_0 : i32, i32
  }
  func.func @transform_2(%arg0: i32) -> (i32, i32) {
    %c0_i32 = arith.constant 0 : i32
    %c0_i32_0 = arith.constant 0 : i32
    %c0_i32_1 = arith.constant 0 : i32
    return %c0_i32, %c0_i32_0 : i32, i32
  }
  func.func @transform_3(%arg0: i32) -> (i32, i32) {
    %c0_i32 = arith.constant 0 : i32
    %c0_i32_0 = arith.constant 0 : i32
    %c0_i32_1 = arith.constant 0 : i32
    return %c0_i32, %c0_i32_0 : i32, i32
  }
  func.func @transform_4(%arg0: i32) -> (i32, i32) {
    %c0_i32 = arith.constant 0 : i32
    %c0_i32_0 = arith.constant 0 : i32
    %c0_i32_1 = arith.constant 0 : i32
    return %c0_i32, %c0_i32_0 : i32, i32
  }
  func.func @transform_5(%arg0: i32) -> (i32, i32) {
    %c0_i32 = arith.constant 0 : i32
    %c0_i32_0 = arith.constant 0 : i32
    %c0_i32_1 = arith.constant 0 : i32
    return %c0_i32, %c0_i32_0 : i32, i32
  }
  func.func @transform_6(%arg0: i32) -> (i32, i32) {
    %c0_i32 = arith.constant 0 : i32
    %c0_i32_0 = arith.constant 0 : i32
    %c0_i32_1 = arith.constant 0 : i32
    return %c0_i32, %c0_i32_0 : i32, i32
  }
  func.func @transform_7(%arg0: i32) -> (i32, i32) {
    %c0_i32 = arith.constant 0 : i32
    %c0_i32_0 = arith.constant 0 : i32
    return %arg0, %c0_i32 : i32, i32
  }
}

module attributes {stable_mosaic.version = 11 : i64} {
  func.func @_region_feat_regression_kernel(%arg0: i32, %arg1: memref<8x32xf32, #tpu.memory_space<vmem>>, %arg2: memref<32x32xf32, #tpu.memory_space<vmem>>, %arg3: memref<1x32xf32, #tpu.memory_space<vmem>>, %arg4: memref<1x32xf32, #tpu.memory_space<vmem>>, %arg5: memref<1x32xf32, #tpu.memory_space<vmem>>, %arg6: memref<32x128xf32, #tpu.memory_space<vmem>>, %arg7: memref<1x128xf32, #tpu.memory_space<vmem>>, %arg8: memref<8x128xf32, #tpu.memory_space<vmem>>) attributes {dimension_semantics = [#tpu.dimension_semantics<parallel>], iteration_bounds = array<i64: 1>, scalar_prefetch = 0 : i64, scratch_operands = 0 : i64, tpu.core_type = #tpu.core_type<tc>, window_params = [{transform_indices = @transform_0, window_bounds = array<i64: 8, 32>}, {pipeline_mode = #tpu.pipeline_mode<synchronous>, transform_indices = @transform_1, window_bounds = array<i64: 32, 32>}, {pipeline_mode = #tpu.pipeline_mode<synchronous>, transform_indices = @transform_2, window_bounds = array<i64: 1, 32>}, {pipeline_mode = #tpu.pipeline_mode<synchronous>, transform_indices = @transform_3, window_bounds = array<i64: 1, 32>}, {pipeline_mode = #tpu.pipeline_mode<synchronous>, transform_indices = @transform_4, window_bounds = array<i64: 1, 32>}, {pipeline_mode = #tpu.pipeline_mode<synchronous>, transform_indices = @transform_5, window_bounds = array<i64: 32, 128>}, {pipeline_mode = #tpu.pipeline_mode<synchronous>, transform_indices = @transform_6, window_bounds = array<i64: 1, 128>}, {transform_indices = @transform_7, window_bounds = array<i64: 8, 128>}]} {
    %c0 = arith.constant 0 : index
    %c0_0 = arith.constant 0 : index
    %0 = vector.load %arg1[%c0, %c0_0] : memref<8x32xf32, #tpu.memory_space<vmem>>, vector<8x32xf32>
    %c0_1 = arith.constant 0 : index
    %c0_2 = arith.constant 0 : index
    %1 = vector.load %arg2[%c0_1, %c0_2] : memref<32x32xf32, #tpu.memory_space<vmem>>, vector<32x32xf32>
    %cst = arith.constant dense<0.000000e+00> : vector<8x32xf32>
    %2 = tpu.matmul %0, %1, %cst {dimension_numbers = #tpu.dot_dimension_numbers<[1], [0], [0], [1], [0, 0, 1, 1], [], []>} : vector<8x32xf32>, vector<32x32xf32>, vector<8x32xf32> -> vector<8x32xf32>
    %c0_3 = arith.constant 0 : index
    %c0_4 = arith.constant 0 : index
    %3 = vector.load %arg3[%c0_3, %c0_4] : memref<1x32xf32, #tpu.memory_space<vmem>>, vector<1x32xf32>
    %4 = vector.broadcast %3 : vector<1x32xf32> to vector<8x32xf32>
    %5 = arith.addf %2, %4 : vector<8x32xf32>
    %cst_5 = arith.constant 5.000000e-01 : f32
    %6 = vector.broadcast %cst_5 : f32 to vector<8x32xf32>
    %7 = arith.mulf %5, %6 : vector<8x32xf32>
    %cst_6 = arith.constant 0.707106769 : f32
    %8 = vector.broadcast %cst_6 : f32 to vector<8x32xf32>
    %9 = arith.mulf %5, %8 : vector<8x32xf32>
    %10 = math.erf %9 : vector<8x32xf32>
    %cst_7 = arith.constant 1.000000e+00 : f32
    %11 = vector.broadcast %cst_7 : f32 to vector<8x32xf32>
    %12 = arith.addf %11, %10 : vector<8x32xf32>
    %13 = arith.mulf %7, %12 : vector<8x32xf32>
    %cst_8 = arith.constant dense<0.000000e+00> : vector<8xf32>
    %14 = vector.multi_reduction <add>, %13, %cst_8 [1] : vector<8x32xf32> to vector<8xf32>
    %15 = vector.shape_cast %14 : vector<8xf32> to vector<8x1xf32>
    %cst_9 = arith.constant 3.200000e+01 : f32
    %16 = vector.broadcast %cst_9 : f32 to vector<8x1xf32>
    %17 = arith.divf %15, %16 : vector<8x1xf32>
    %18 = vector.broadcast %17 : vector<8x1xf32> to vector<8x32xf32>
    %19 = arith.subf %13, %18 : vector<8x32xf32>
    %20 = arith.mulf %19, %19 : vector<8x32xf32>
    %cst_10 = arith.constant dense<0.000000e+00> : vector<8xf32>
    %21 = vector.multi_reduction <add>, %20, %cst_10 [1] : vector<8x32xf32> to vector<8xf32>
    %22 = vector.shape_cast %21 : vector<8xf32> to vector<8x1xf32>
    %cst_11 = arith.constant 3.200000e+01 : f32
    %23 = vector.broadcast %cst_11 : f32 to vector<8x1xf32>
    %24 = arith.divf %22, %23 : vector<8x1xf32>
    %cst_12 = arith.constant 9.99999996E-13 : f32
    %25 = vector.broadcast %cst_12 : f32 to vector<8x1xf32>
    %26 = arith.addf %24, %25 : vector<8x1xf32>
    %27 = math.rsqrt %26 : vector<8x1xf32>
    %28 = vector.broadcast %27 : vector<8x1xf32> to vector<8x32xf32>
    %29 = arith.mulf %19, %28 : vector<8x32xf32>
    %c0_13 = arith.constant 0 : index
    %c0_14 = arith.constant 0 : index
    %30 = vector.load %arg4[%c0_13, %c0_14] : memref<1x32xf32, #tpu.memory_space<vmem>>, vector<1x32xf32>
    %31 = vector.broadcast %30 : vector<1x32xf32> to vector<8x32xf32>
    %32 = arith.mulf %29, %31 : vector<8x32xf32>
    %c0_15 = arith.constant 0 : index
    %c0_16 = arith.constant 0 : index
    %33 = vector.load %arg5[%c0_15, %c0_16] : memref<1x32xf32, #tpu.memory_space<vmem>>, vector<1x32xf32>
    %34 = vector.broadcast %33 : vector<1x32xf32> to vector<8x32xf32>
    %35 = arith.addf %32, %34 : vector<8x32xf32>
    %c0_17 = arith.constant 0 : index
    %c0_18 = arith.constant 0 : index
    %36 = vector.load %arg6[%c0_17, %c0_18] : memref<32x128xf32, #tpu.memory_space<vmem>>, vector<32x128xf32>
    %cst_19 = arith.constant dense<0.000000e+00> : vector<8x128xf32>
    %37 = tpu.matmul %35, %36, %cst_19 {dimension_numbers = #tpu.dot_dimension_numbers<[1], [0], [0], [1], [0, 0, 1, 1], [], []>} : vector<8x32xf32>, vector<32x128xf32>, vector<8x128xf32> -> vector<8x128xf32>
    %c0_20 = arith.constant 0 : index
    %c0_21 = arith.constant 0 : index
    %38 = vector.load %arg7[%c0_20, %c0_21] : memref<1x128xf32, #tpu.memory_space<vmem>>, vector<1x128xf32>
    %39 = vector.broadcast %38 : vector<1x128xf32> to vector<8x128xf32>
    %40 = arith.addf %37, %39 : vector<8x128xf32>
    %c0_22 = arith.constant 0 : index
    %c0_23 = arith.constant 0 : index
    %41 = vector.load %arg8[%c0_22, %c0_23] : memref<8x128xf32, #tpu.memory_space<vmem>>, vector<8x128xf32>
    tpu.vector_store %arg8[%c0_22, %c0_23], %40 {strides = array<i32>} : memref<8x128xf32, #tpu.memory_space<vmem>>, vector<8x128xf32>,
    return
  }
  func.func @transform_0(%arg0: i32) -> (i32, i32) {
    %c0_i32 = arith.constant 0 : i32
    %c0_i32_0 = arith.constant 0 : i32
    return %arg0, %c0_i32 : i32, i32
  }
  func.func @transform_1(%arg0: i32) -> (i32, i32) {
    %c0_i32 = arith.constant 0 : i32
    %c0_i32_0 = arith.constant 0 : i32
    %c0_i32_1 = arith.constant 0 : i32
    return %c0_i32, %c0_i32_0 : i32, i32
  }
  func.func @transform_2(%arg0: i32) -> (i32, i32) {
    %c0_i32 = arith.constant 0 : i32
    %c0_i32_0 = arith.constant 0 : i32
    %c0_i32_1 = arith.constant 0 : i32
    return %c0_i32, %c0_i32_0 : i32, i32
  }
  func.func @transform_3(%arg0: i32) -> (i32, i32) {
    %c0_i32 = arith.constant 0 : i32
    %c0_i32_0 = arith.constant 0 : i32
    %c0_i32_1 = arith.constant 0 : i32
    return %c0_i32, %c0_i32_0 : i32, i32
  }
  func.func @transform_4(%arg0: i32) -> (i32, i32) {
    %c0_i32 = arith.constant 0 : i32
    %c0_i32_0 = arith.constant 0 : i32
    %c0_i32_1 = arith.constant 0 : i32
    return %c0_i32, %c0_i32_0 : i32, i32
  }
  func.func @transform_5(%arg0: i32) -> (i32, i32) {
    %c0_i32 = arith.constant 0 : i32
    %c0_i32_0 = arith.constant 0 : i32
    %c0_i32_1 = arith.constant 0 : i32
    return %c0_i32, %c0_i32_0 : i32, i32
  }
  func.func @transform_6(%arg0: i32) -> (i32, i32) {
    %c0_i32 = arith.constant 0 : i32
    %c0_i32_0 = arith.constant 0 : i32
    %c0_i32_1 = arith.constant 0 : i32
    return %c0_i32, %c0_i32_0 : i32, i32
  }
  func.func @transform_7(%arg0: i32) -> (i32, i32) {
    %c0_i32 = arith.constant 0 : i32
    %c0_i32_0 = arith.constant 0 : i32
    return %arg0, %c0_i32 : i32, i32
  }
}

</mosaic_0001>

<llo_original>
// kernel: tpu_custom_call.1
$region0: #{tpu_custom_call.1}
  #allocation0 [shape = 'u32[]', space=smem, size = 0x4, offset = 0x4, fixed_abs, tag = 'smem constant byte address 0x4 - core index']
  #allocation1 [shape = 'u32[144,128]{1,0:T(1,128)}', space=vmem, size = 0x12000, scoped, tag = 'internal scratch']
  %s0 = inlined_call_operand.hbm [shape: f32[8,32], index: 0, kind: input, shape index: {}]
  %s1 = inlined_call_operand.hbm [shape: f32[32,32], index: 1, kind: input, shape index: {}]
  %s2 = inlined_call_operand.vmem [shape: f32[1,32], index: 2, kind: input, shape index: {}]
  %s3 = inlined_call_operand.vmem [shape: f32[1,32], index: 3, kind: input, shape index: {}]
  %s4 = inlined_call_operand.vmem [shape: f32[1,32], index: 4, kind: input, shape index: {}]
  %s5 = inlined_call_operand.hbm [shape: f32[32,128], index: 5, kind: input, shape index: {}]
  %s6 = inlined_call_operand.vmem [shape: f32[1,128], index: 6, kind: input, shape index: {}]
  %s7 = inlined_call_operand.hbm [shape: f32[8,128], index: 7, kind: output, shape index: {}]
  %s8 = sld [smem:[#allocation0]]
  $region50: #{tpu_custom_call.1} parent=0
    _
  %s10 = ssub.s32 1, %s8
  %s11 = scalar_select 0, %s10, %s8
  $region1: #{tpu_custom_call.1} parent=0
    #allocation2 [shape = 'u8[4096]{0}', space=vmem, size = 0x1000, scoped, tag = 'input window, operand 0, single buffered']
    #allocation3 [shape = 's32[1]{0}', space=sflag, size = 0x4, scoped, tag = 'scoped memory for tpu_custom_call.1']
    #allocation4 [shape = 's32[1]{0}', space=sflag, size = 0x4, scoped, tag = 'scoped memory for tpu_custom_call.1']
    #allocation5 [shape = 'u8[16384]{0}', space=vmem, size = 0x4000, scoped, tag = 'input window, operand 1, single buffered']
    #allocation6 [shape = 's32[1]{0}', space=sflag, size = 0x4, scoped, tag = 'scoped memory for tpu_custom_call.1']
    #allocation7 [shape = 'u8[16384]{0}', space=vmem, size = 0x4000, scoped, tag = 'input window, operand 5, single buffered']
    #allocation8 [shape = 'u8[4096]{0}', space=vmem, size = 0x1000, scoped, tag = 'output window, operand 0, single buffered']
    %12 = vsyncpa [#allocation3], 0
    %13 = vsyncpa [#allocation6], 0
    %14 = vsyncpa [#allocation4], 0
    // Predicated region
    $region2: #{tpu_custom_call.1} parent=1 // pred_check
      _
    $region3: #{tpu_custom_call.1} parent=1 // pred_check_branch
      %16 = sbr.rel (0) target = $region5
    $region4: #{tpu_custom_call.1} parent=1 // pred_region
      %s18 = ssub.s32 128, 128
      %19 = vsyncadd [#allocation3], %s18
      %s21 = sshll.u32 [#allocation2], 4
      %s22 = int_to_ptr.vmem [resolvable:$true] %s21
      %24 = dma.hbm_to_vmem [thread:$0]  %s0, 128, %s22, [#allocation3]
    $region5: #{tpu_custom_call.1} parent=1 // pred_fallthru
      _
    // Predicated region
    $region6: #{tpu_custom_call.1} parent=1 // pred_check
      _
    $region7: #{tpu_custom_call.1} parent=1 // pred_check_branch
      %26 = sbr.rel (0) target = $region9
    $region8: #{tpu_custom_call.1} parent=1 // pred_region
      %s28 = ssub.s32 512, 512
      %29 = vsyncadd [#allocation6], %s28
      %s30 = sshll.u32 [#allocation5], 4
      %s31 = int_to_ptr.vmem [resolvable:$true] %s30
      %36 = dma.hbm_to_vmem [thread:$0]  %s1, 512, %s31, [#allocation6], 128, 128, 8
    $region9: #{tpu_custom_call.1} parent=1 // pred_fallthru
      _
    // Predicated region
    $region10: #{tpu_custom_call.1} parent=1 // pred_check
      _
    $region11: #{tpu_custom_call.1} parent=1 // pred_check_branch
      %38 = sbr.rel (0) target = $region13
    $region12: #{tpu_custom_call.1} parent=1 // pred_region
      _
    $region13: #{tpu_custom_call.1} parent=1 // pred_fallthru
      _
    // Predicated region
    $region14: #{tpu_custom_call.1} parent=1 // pred_check
      _
    $region15: #{tpu_custom_call.1} parent=1 // pred_check_branch
      %40 = sbr.rel (0) target = $region17
    $region16: #{tpu_custom_call.1} parent=1 // pred_region
      _
    $region17: #{tpu_custom_call.1} parent=1 // pred_fallthru
      _
    // Predicated region
    $region18: #{tpu_custom_call.1} parent=1 // pred_check
      _
    $region19: #{tpu_custom_call.1} parent=1 // pred_check_branch
      %42 = sbr.rel (0) target = $region21
    $region20: #{tpu_custom_call.1} parent=1 // pred_region
      _
    $region21: #{tpu_custom_call.1} parent=1 // pred_fallthru
      _
    // Predicated region
    $region22: #{tpu_custom_call.1} parent=1 // pred_check
      _
    $region23: #{tpu_custom_call.1} parent=1 // pred_check_branch
      %44 = sbr.rel (0) target = $region25
    $region24: #{tpu_custom_call.1} parent=1 // pred_region
      %s46 = ssub.s32 512, 512
      %47 = vsyncadd [#allocation6], %s46
      %s48 = sshll.u32 [#allocation7], 4
      %s49 = int_to_ptr.vmem [resolvable:$true] %s48
      %54 = dma.hbm_to_vmem [thread:$0]  %s5, 512, %s49, [#allocation6], 128, 128, 8
    $region25: #{tpu_custom_call.1} parent=1 // pred_fallthru
      _
    // Predicated region
    $region26: #{tpu_custom_call.1} parent=1 // pred_check
      _
    $region27: #{tpu_custom_call.1} parent=1 // pred_check_branch
      %56 = sbr.rel (0) target = $region29
    $region28: #{tpu_custom_call.1} parent=1 // pred_region
      _
    $region29: #{tpu_custom_call.1} parent=1 // pred_fallthru
      _
    // Predicated region
    $region30: #{tpu_custom_call.1} parent=1 // pred_check
      _
    $region31: #{tpu_custom_call.1} parent=1 // pred_check_branch
      %58 = sbr.rel (0) target = $region33
    $region32: #{tpu_custom_call.1} parent=1 // pred_region
      %59 = dma.done [#allocation3], 128
    $region33: #{tpu_custom_call.1} parent=1 // pred_fallthru
      _
    // Predicated region
    $region34: #{tpu_custom_call.1} parent=1 // pred_check
      _
    $region35: #{tpu_custom_call.1} parent=1 // pred_check_branch
      %61 = sbr.rel (0) target = $region37
    $region36: #{tpu_custom_call.1} parent=1 // pred_region
      %62 = dma.done [#allocation6], 512
    $region37: #{tpu_custom_call.1} parent=1 // pred_fallthru
      _
    // Predicated region
    $region38: #{tpu_custom_call.1} parent=1 // pred_check
      _
    $region39: #{tpu_custom_call.1} parent=1 // pred_check_branch
      %64 = sbr.rel (0) target = $region41
    $region40: #{tpu_custom_call.1} parent=1 // pred_region
      %65 = dma.done [#allocation6], 512
    $region41: #{tpu_custom_call.1} parent=1 // pred_fallthru
      _
    %v66 = vld [vmem:[#allocation2] sm:$0xff]
    %v67 = vld [vmem:[#allocation5] sm:$0xff]
    %v68 = vld [vmem:[#allocation5 + $0x8] sm:$0xff]
    %v69 = vld [vmem:[#allocation5 + $0x10] sm:$0xff]
    %v70 = vld [vmem:[#allocation5 + $0x18] sm:$0xff]
    %v71 = vld [vmem:[%s2] sm:$0x1]
    %v73 = vlaneseq
    %v74 = vshrl.u32 %v73, 7
    %v75 = vsub.s32 0, %v74
    %v76 = vrot.slane %v71, %v75
    %vm78 = vcmask 261120
    %v80 = vsel %vm78, %v66, 0
    %82 = vmatprep.subr.mxu0 0.0
    %83 = vmatpush1.msra.mxu0 %v67
    %84 = vmatprep.subr.mxu0 0.0
    %85 = vmatpush1.msra.mxu0 %v68
    %86 = vmatprep.subr.mxu0 0.0
    %87 = vmatpush1.msra.mxu0 %v69
    %88 = vmatprep.subr.mxu0 0.0
    %89 = vmatpush1.msra.mxu0 %v70
    %90 = vmatprep.subr.mxu0 0.0
    %91 = vmatpush1.msra.mxu0 0.0
    %92 = vmatprep.subr.mxu0 0.0
    %93 = vmatpush1.msra.mxu0 0.0
    %94 = vmatprep.subr.mxu0 0.0
    %95 = vmatpush1.msra.mxu0 0.0
    %96 = vmatprep.subr.mxu0 0.0
    %97 = vmatpush1.msra.mxu0 0.0
    %98 = vmatprep.subr.mxu0 0.0
    %99 = vmatpush1.msra.mxu0 0.0
    %100 = vmatprep.subr.mxu0 0.0
    %101 = vmatpush1.msra.mxu0 0.0
    %102 = vmatprep.subr.mxu0 0.0
    %103 = vmatpush1.msra.mxu0 0.0
    %104 = vmatprep.subr.mxu0 0.0
    %105 = vmatpush1.msra.mxu0 0.0
    %106 = vmatprep.subr.mxu0 0.0
    %107 = vmatpush1.msra.mxu0 0.0
    %108 = vmatprep.subr.mxu0 0.0
    %109 = vmatpush1.msra.mxu0 0.0
    %110 = vmatprep.subr.mxu0 0.0
    %111 = vmatpush1.msra.mxu0 0.0
    %112 = vmatprep.subr.mxu0 0.0
    %113 = vmatpush1.msra.mxu0 0.0
    %114 = vmatprep.subr.mxu0 0.0
    %115 = vmatpush1.msra.mxu0 0.0
    %116 = vmatprep.subr.mxu0 0.0
    %117 = vmatpush1.msra.mxu0 0.0
    %118 = vmatprep.subr.mxu0 0.0
    %119 = vmatpush1.msra.mxu0 0.0
    %120 = vmatprep.subr.mxu0 0.0
    %121 = vmatpush1.msra.mxu0 0.0
    %122 = vmatprep.subr.mxu0 0.0
    %123 = vmatpush1.msra.mxu0 0.0
    %124 = vmatprep.subr.mxu0 0.0
    %125 = vmatpush1.msra.mxu0 0.0
    %126 = vmatprep.subr.mxu0 0.0
    %127 = vmatpush1.msra.mxu0 0.0
    %128 = vmatprep.subr.mxu0 0.0
    %129 = vmatpush1.msra.mxu0 0.0
    %130 = vmatprep.subr.mxu0 0.0
    %131 = vmatpush1.msra.mxu0 0.0
    %132 = vmatprep.subr.mxu0 0.0
    %133 = vmatpush1.msra.mxu0 0.0
    %134 = vmatprep.subr.mxu0 0.0
    %135 = vmatpush1.msra.mxu0 0.0
    %136 = vmatprep.subr.mxu0 0.0
    %137 = vmatpush1.msra.mxu0 0.0
    %138 = vmatprep.subr.mxu0 0.0
    %139 = vmatpush1.msra.mxu0 0.0
    %140 = vmatprep.subr.mxu0 0.0
    %141 = vmatpush1.msra.mxu0 0.0
    %142 = vmatprep.subr.mxu0 0.0
    %143 = vmatpush1.msra.mxu0 0.0
    %144 = vmatprep.subr.mxu0 0.0
    %145 = vmatpush1.msra.mxu0 0.0
    %146 = vmatprep.mubr.f32.mxu0 0.0
    %147 = vmatmul.mubr.f32.gmra.mrb[0].mxu0 %v80
    %v148 = vpop.f32.mrb[0].mxu0
    %v149 = vadd.f32 %v76, %v148
    %v150 = vpop.f32.mrb[0].mxu0
    %151 = vdwg.mxu0
    %v152 = vmul.f32 %v149, 0.5
    %v153 = vmul.f32 %v149, 0.70710677
    %v154 = verf.f32.pop %v153
    %v155 = vadd.f32 %v154, 1.0
    %v156 = vmul.f32 %v152, %v155
    %v157 = vsel %vm78, %v156, 0.0
    %158 = vadd.xlane.f32.xlu0 %v157
    %v159 = vpop.xlane.xlu0 %158
    %v160 = vrcp.pop 32.0
    %v161 = vmul.f32 %v159, %v160
    %v162 = vsub.f32 %v156, %v161
    %v163 = vmul.f32 %v162, %v162
    %v164 = vsel %vm78, %v163, 0.0
    %165 = vadd.xlane.f32.xlu0 %v164
    %v166 = vpop.xlane.xlu0 %165
    %v167 = vmul.f32 %v166, %v160
    %v168 = vadd.f32 %v167, 1e-12
    %v169 = vrsqrt.pop %v168
    %v170 = vmul.f32 %v162, %v169
    %v171 = vld [vmem:[%s3] sm:$0x1]
    %v173 = vlaneseq
    %v174 = vshrl.u32 %v173, 7
    %v175 = vsub.s32 0, %v174
    %v176 = vrot.slane %v171, %v175
    %v178 = vmul.f32 %v170, %v176
    %v179 = vld [vmem:[%s4] sm:$0x1]
    %v181 = vlaneseq
    %v182 = vshrl.u32 %v181, 7
    %v183 = vsub.s32 0, %v182
    %v184 = vrot.slane %v179, %v183
    %v186 = vadd.f32 %v178, %v184
    %v187 = vld [vmem:[#allocation7] sm:$0xff]
    %v188 = vld [vmem:[#allocation7 + $0x8] sm:$0xff]
    %v189 = vld [vmem:[#allocation7 + $0x10] sm:$0xff]
    %v190 = vld [vmem:[#allocation7 + $0x18] sm:$0xff]
    %v191 = vld [vmem:[%s6] sm:$0x1]
    %v193 = vlaneseq
    %v194 = vshrl.u32 %v193, 7
    %v195 = vsub.s32 0, %v194
    %v196 = vrot.slane %v191, %v195
    %v199 = vsel %vm78, %v186, 0
    %201 = vmatprep.subr.mxu0 0.0
    %202 = vmatpush1.msra.mxu0 %v187
    %203 = vmatprep.subr.mxu0 0.0
    %204 = vmatpush1.msra.mxu0 %v188
    %205 = vmatprep.subr.mxu0 0.0
    %206 = vmatpush1.msra.mxu0 %v189
    %207 = vmatprep.subr.mxu0 0.0
    %208 = vmatpush1.msra.mxu0 %v190
    %209 = vmatprep.subr.mxu0 0.0
    %210 = vmatpush1.msra.mxu0 0.0
    %211 = vmatprep.subr.mxu0 0.0
    %212 = vmatpush1.msra.mxu0 0.0
    %213 = vmatprep.subr.mxu0 0.0
    %214 = vmatpush1.msra.mxu0 0.0
    %215 = vmatprep.subr.mxu0 0.0
    %216 = vmatpush1.msra.mxu0 0.0
    %217 = vmatprep.subr.mxu0 0.0
    %218 = vmatpush1.msra.mxu0 0.0
    %219 = vmatprep.subr.mxu0 0.0
    %220 = vmatpush1.msra.mxu0 0.0
    %221 = vmatprep.subr.mxu0 0.0
    %222 = vmatpush1.msra.mxu0 0.0
    %223 = vmatprep.subr.mxu0 0.0
    %224 = vmatpush1.msra.mxu0 0.0
    %225 = vmatprep.subr.mxu0 0.0
    %226 = vmatpush1.msra.mxu0 0.0
    %227 = vmatprep.subr.mxu0 0.0
    %228 = vmatpush1.msra.mxu0 0.0
    %229 = vmatprep.subr.mxu0 0.0
    %230 = vmatpush1.msra.mxu0 0.0
    %231 = vmatprep.subr.mxu0 0.0
    %232 = vmatpush1.msra.mxu0 0.0
    %233 = vmatprep.subr.mxu0 0.0
    %234 = vmatpush1.msra.mxu0 0.0
    %235 = vmatprep.subr.mxu0 0.0
    %236 = vmatpush1.msra.mxu0 0.0
    %237 = vmatprep.subr.mxu0 0.0
    %238 = vmatpush1.msra.mxu0 0.0
    %239 = vmatprep.subr.mxu0 0.0
    %240 = vmatpush1.msra.mxu0 0.0
    %241 = vmatprep.subr.mxu0 0.0
    %242 = vmatpush1.msra.mxu0 0.0
    %243 = vmatprep.subr.mxu0 0.0
    %244 = vmatpush1.msra.mxu0 0.0
    %245 = vmatprep.subr.mxu0 0.0
    %246 = vmatpush1.msra.mxu0 0.0
    %247 = vmatprep.subr.mxu0 0.0
    %248 = vmatpush1.msra.mxu0 0.0
    %249 = vmatprep.subr.mxu0 0.0
    %250 = vmatpush1.msra.mxu0 0.0
    %251 = vmatprep.subr.mxu0 0.0
    %252 = vmatpush1.msra.mxu0 0.0
    %253 = vmatprep.subr.mxu0 0.0
    %254 = vmatpush1.msra.mxu0 0.0
    %255 = vmatprep.subr.mxu0 0.0
    %256 = vmatpush1.msra.mxu0 0.0
    %257 = vmatprep.subr.mxu0 0.0
    %258 = vmatpush1.msra.mxu0 0.0
    %259 = vmatprep.subr.mxu0 0.0
    %260 = vmatpush1.msra.mxu0 0.0
    %261 = vmatprep.subr.mxu0 0.0
    %262 = vmatpush1.msra.mxu0 0.0
    %263 = vmatprep.subr.mxu0 0.0
    %264 = vmatpush1.msra.mxu0 0.0
    %265 = vmatprep.mubr.f32.mxu0 0.0
    %266 = vmatmul.mubr.f32.gmra.mrb[0].mxu0 %v199
    %v267 = vpop.f32.mrb[0].mxu0
    %v268 = vadd.f32 %v196, %v267
    %v269 = vpop.f32.mrb[0].mxu0
    %270 = vdwg.mxu0
    %271 = vst [vmem:[#allocation8] sm:$0xff] %v268
    // Predicated region
    $region42: #{tpu_custom_call.1} parent=1 // pred_check
      _
    $region43: #{tpu_custom_call.1} parent=1 // pred_check_branch
      %273 = sbr.rel (0) target = $region45
    $region44: #{tpu_custom_call.1} parent=1 // pred_region
      %s275 = ssub.s32 128, 128
      %276 = vsyncadd [#allocation4], %s275
      %s278 = sshll.u32 [#allocation8], 4
      %s279 = int_to_ptr.vmem [resolvable:$true] %s278
      %281 = dma.vmem_to_hbm [thread:$0]  %s279, 128, %s7, [#allocation4]
    $region45: #{tpu_custom_call.1} parent=1 // pred_fallthru
      _
    // Predicated region
    $region46: #{tpu_custom_call.1} parent=1 // pred_check
      _
    $region47: #{tpu_custom_call.1} parent=1 // pred_check_branch
      %283 = sbr.rel (0) target = $region49
    $region48: #{tpu_custom_call.1} parent=1 // pred_region
      %284 = dma.done [#allocation4], 128
    $region49: #{tpu_custom_call.1} parent=1 // pred_fallthru
      _
    %285 = vsyncpa [#allocation3], 1
    %286 = vsyncpa [#allocation6], 1
    %287 = vsyncpa [#allocation4], 1

// kernel: tpu_custom_call.1
$region0: #{tpu_custom_call.1}
  #allocation0 [shape = 'u32[]', space=smem, size = 0x4, offset = 0x4, fixed_abs, tag = 'smem constant byte address 0x4 - core index']
  #allocation1 [shape = 'u32[144,128]{1,0:T(1,128)}', space=vmem, size = 0x12000, scoped, tag = 'internal scratch']
  %s0 = inlined_call_operand.hbm [shape: f32[8,32], index: 0, kind: input, shape index: {}]
  %s1 = inlined_call_operand.hbm [shape: f32[32,32], index: 1, kind: input, shape index: {}]
  %s2 = inlined_call_operand.vmem [shape: f32[1,32], index: 2, kind: input, shape index: {}]
  %s3 = inlined_call_operand.vmem [shape: f32[1,32], index: 3, kind: input, shape index: {}]
  %s4 = inlined_call_operand.vmem [shape: f32[1,32], index: 4, kind: input, shape index: {}]
  %s5 = inlined_call_operand.hbm [shape: f32[32,128], index: 5, kind: input, shape index: {}]
  %s6 = inlined_call_operand.vmem [shape: f32[1,128], index: 6, kind: input, shape index: {}]
  %s7 = inlined_call_operand.hbm [shape: f32[8,128], index: 7, kind: output, shape index: {}]
  %s8 = sld [smem:[#allocation0]]
  $region50: #{tpu_custom_call.1} parent=0
    _
  %s10 = ssub.s32 1, %s8
  %s11 = scalar_select 0, %s10, %s8
  $region1: #{tpu_custom_call.1} parent=0
    #allocation2 [shape = 'u8[4096]{0}', space=vmem, size = 0x1000, scoped, tag = 'input window, operand 0, single buffered']
    #allocation3 [shape = 's32[1]{0}', space=sflag, size = 0x4, scoped, tag = 'scoped memory for tpu_custom_call.1']
    #allocation4 [shape = 's32[1]{0}', space=sflag, size = 0x4, scoped, tag = 'scoped memory for tpu_custom_call.1']
    #allocation5 [shape = 'u8[16384]{0}', space=vmem, size = 0x4000, scoped, tag = 'input window, operand 1, single buffered']
    #allocation6 [shape = 's32[1]{0}', space=sflag, size = 0x4, scoped, tag = 'scoped memory for tpu_custom_call.1']
    #allocation7 [shape = 'u8[16384]{0}', space=vmem, size = 0x4000, scoped, tag = 'input window, operand 5, single buffered']
    #allocation8 [shape = 'u8[4096]{0}', space=vmem, size = 0x1000, scoped, tag = 'output window, operand 0, single buffered']
    %12 = vsyncpa [#allocation3], 0
    %13 = vsyncpa [#allocation6], 0
    %14 = vsyncpa [#allocation4], 0
    // Predicated region
    $region2: #{tpu_custom_call.1} parent=1 // pred_check
      _
    $region3: #{tpu_custom_call.1} parent=1 // pred_check_branch
      %16 = sbr.rel (0) target = $region5
    $region4: #{tpu_custom_call.1} parent=1 // pred_region
      %s18 = ssub.s32 128, 128
      %19 = vsyncadd [#allocation3], %s18
      %s21 = sshll.u32 [#allocation2], 4
      %s22 = int_to_ptr.vmem [resolvable:$true] %s21
      %24 = dma.hbm_to_vmem [thread:$0]  %s0, 128, %s22, [#allocation3]
    $region5: #{tpu_custom_call.1} parent=1 // pred_fallthru
      _
    // Predicated region
    $region6: #{tpu_custom_call.1} parent=1 // pred_check
      _
    $region7: #{tpu_custom_call.1} parent=1 // pred_check_branch
      %26 = sbr.rel (0) target = $region9
    $region8: #{tpu_custom_call.1} parent=1 // pred_region
      %s28 = ssub.s32 512, 512
      %29 = vsyncadd [#allocation6], %s28
      %s30 = sshll.u32 [#allocation5], 4
      %s31 = int_to_ptr.vmem [resolvable:$true] %s30
      %36 = dma.hbm_to_vmem [thread:$0]  %s1, 512, %s31, [#allocation6], 128, 128, 8
    $region9: #{tpu_custom_call.1} parent=1 // pred_fallthru
      _
    // Predicated region
    $region10: #{tpu_custom_call.1} parent=1 // pred_check
      _
    $region11: #{tpu_custom_call.1} parent=1 // pred_check_branch
      %38 = sbr.rel (0) target = $region13
    $region12: #{tpu_custom_call.1} parent=1 // pred_region
      _
    $region13: #{tpu_custom_call.1} parent=1 // pred_fallthru
      _
    // Predicated region
    $region14: #{tpu_custom_call.1} parent=1 // pred_check
      _
    $region15: #{tpu_custom_call.1} parent=1 // pred_check_branch
      %40 = sbr.rel (0) target = $region17
    $region16: #{tpu_custom_call.1} parent=1 // pred_region
      _
    $region17: #{tpu_custom_call.1} parent=1 // pred_fallthru
      _
    // Predicated region
    $region18: #{tpu_custom_call.1} parent=1 // pred_check
      _
    $region19: #{tpu_custom_call.1} parent=1 // pred_check_branch
      %42 = sbr.rel (0) target = $region21
    $region20: #{tpu_custom_call.1} parent=1 // pred_region
      _
    $region21: #{tpu_custom_call.1} parent=1 // pred_fallthru
      _
    // Predicated region
    $region22: #{tpu_custom_call.1} parent=1 // pred_check
      _
    $region23: #{tpu_custom_call.1} parent=1 // pred_check_branch
      %44 = sbr.rel (0) target = $region25
    $region24: #{tpu_custom_call.1} parent=1 // pred_region
      %s46 = ssub.s32 512, 512
      %47 = vsyncadd [#allocation6], %s46
      %s48 = sshll.u32 [#allocation7], 4
      %s49 = int_to_ptr.vmem [resolvable:$true] %s48
      %54 = dma.hbm_to_vmem [thread:$0]  %s5, 512, %s49, [#allocation6], 128, 128, 8
    $region25: #{tpu_custom_call.1} parent=1 // pred_fallthru
      _
    // Predicated region
    $region26: #{tpu_custom_call.1} parent=1 // pred_check
      _
    $region27: #{tpu_custom_call.1} parent=1 // pred_check_branch
      %56 = sbr.rel (0) target = $region29
    $region28: #{tpu_custom_call.1} parent=1 // pred_region
      _
    $region29: #{tpu_custom_call.1} parent=1 // pred_fallthru
      _
    // Predicated region
    $region30: #{tpu_custom_call.1} parent=1 // pred_check
      _
    $region31: #{tpu_custom_call.1} parent=1 // pred_check_branch
      %58 = sbr.rel (0) target = $region33
    $region32: #{tpu_custom_call.1} parent=1 // pred_region
      %59 = dma.done [#allocation3], 128
    $region33: #{tpu_custom_call.1} parent=1 // pred_fallthru
      _
    // Predicated region
    $region34: #{tpu_custom_call.1} parent=1 // pred_check
      _
    $region35: #{tpu_custom_call.1} parent=1 // pred_check_branch
      %61 = sbr.rel (0) target = $region37
    $region36: #{tpu_custom_call.1} parent=1 // pred_region
      %62 = dma.done [#allocation6], 512
    $region37: #{tpu_custom_call.1} parent=1 // pred_fallthru
      _
    // Predicated region
    $region38: #{tpu_custom_call.1} parent=1 // pred_check
      _
    $region39: #{tpu_custom_call.1} parent=1 // pred_check_branch
      %64 = sbr.rel (0) target = $region41
    $region40: #{tpu_custom_call.1} parent=1 // pred_region
      %65 = dma.done [#allocation6], 512
    $region41: #{tpu_custom_call.1} parent=1 // pred_fallthru
      _
    %v66 = vld [vmem:[#allocation2] sm:$0xff]
    %v67 = vld [vmem:[#allocation5] sm:$0xff]
    %v68 = vld [vmem:[#allocation5 + $0x8] sm:$0xff]
    %v69 = vld [vmem:[#allocation5 + $0x10] sm:$0xff]
    %v70 = vld [vmem:[#allocation5 + $0x18] sm:$0xff]
    %v71 = vld [vmem:[%s2] sm:$0x1]
    %v73 = vlaneseq
    %v74 = vshrl.u32 %v73, 7
    %v75 = vsub.s32 0, %v74
    %v76 = vrot.slane %v71, %v75
    %vm78 = vcmask 261120
    %v80 = vsel %vm78, %v66, 0
    %82 = vmatprep.subr.mxu0 0.0
    %83 = vmatpush1.msra.mxu0 %v67
    %84 = vmatprep.subr.mxu0 0.0
    %85 = vmatpush1.msra.mxu0 %v68
    %86 = vmatprep.subr.mxu0 0.0
    %87 = vmatpush1.msra.mxu0 %v69
    %88 = vmatprep.subr.mxu0 0.0
    %89 = vmatpush1.msra.mxu0 %v70
    %90 = vmatprep.subr.mxu0 0.0
    %91 = vmatpush1.msra.mxu0 0.0
    %92 = vmatprep.subr.mxu0 0.0
    %93 = vmatpush1.msra.mxu0 0.0
    %94 = vmatprep.subr.mxu0 0.0
    %95 = vmatpush1.msra.mxu0 0.0
    %96 = vmatprep.subr.mxu0 0.0
    %97 = vmatpush1.msra.mxu0 0.0
    %98 = vmatprep.subr.mxu0 0.0
    %99 = vmatpush1.msra.mxu0 0.0
    %100 = vmatprep.subr.mxu0 0.0
    %101 = vmatpush1.msra.mxu0 0.0
    %102 = vmatprep.subr.mxu0 0.0
    %103 = vmatpush1.msra.mxu0 0.0
    %104 = vmatprep.subr.mxu0 0.0
    %105 = vmatpush1.msra.mxu0 0.0
    %106 = vmatprep.subr.mxu0 0.0
    %107 = vmatpush1.msra.mxu0 0.0
    %108 = vmatprep.subr.mxu0 0.0
    %109 = vmatpush1.msra.mxu0 0.0
    %110 = vmatprep.subr.mxu0 0.0
    %111 = vmatpush1.msra.mxu0 0.0
    %112 = vmatprep.subr.mxu0 0.0
    %113 = vmatpush1.msra.mxu0 0.0
    %114 = vmatprep.subr.mxu0 0.0
    %115 = vmatpush1.msra.mxu0 0.0
    %116 = vmatprep.subr.mxu0 0.0
    %117 = vmatpush1.msra.mxu0 0.0
    %118 = vmatprep.subr.mxu0 0.0
    %119 = vmatpush1.msra.mxu0 0.0
    %120 = vmatprep.subr.mxu0 0.0
    %121 = vmatpush1.msra.mxu0 0.0
    %122 = vmatprep.subr.mxu0 0.0
    %123 = vmatpush1.msra.mxu0 0.0
    %124 = vmatprep.subr.mxu0 0.0
    %125 = vmatpush1.msra.mxu0 0.0
    %126 = vmatprep.subr.mxu0 0.0
    %127 = vmatpush1.msra.mxu0 0.0
    %128 = vmatprep.subr.mxu0 0.0
    %129 = vmatpush1.msra.mxu0 0.0
    %130 = vmatprep.subr.mxu0 0.0
    %131 = vmatpush1.msra.mxu0 0.0
    %132 = vmatprep.subr.mxu0 0.0
    %133 = vmatpush1.msra.mxu0 0.0
    %134 = vmatprep.subr.mxu0 0.0
    %135 = vmatpush1.msra.mxu0 0.0
    %136 = vmatprep.subr.mxu0 0.0
    %137 = vmatpush1.msra.mxu0 0.0
    %138 = vmatprep.subr.mxu0 0.0
    %139 = vmatpush1.msra.mxu0 0.0
    %140 = vmatprep.subr.mxu0 0.0
    %141 = vmatpush1.msra.mxu0 0.0
    %142 = vmatprep.subr.mxu0 0.0
    %143 = vmatpush1.msra.mxu0 0.0
    %144 = vmatprep.subr.mxu0 0.0
    %145 = vmatpush1.msra.mxu0 0.0
    %146 = vmatprep.mubr.f32.mxu0 0.0
    %147 = vmatmul.mubr.f32.gmra.mrb[0].mxu0 %v80
    %v148 = vpop.f32.mrb[0].mxu0
    %v149 = vadd.f32 %v76, %v148
    %v150 = vpop.f32.mrb[0].mxu0
    %151 = vdwg.mxu0
    %v152 = vmul.f32 %v149, 0.5
    %v153 = vmul.f32 %v149, 0.70710677
    %v154 = verf.f32.pop %v153
    %v155 = vadd.f32 %v154, 1.0
    %v156 = vmul.f32 %v152, %v155
    %v157 = vsel %vm78, %v156, 0.0
    %158 = vadd.xlane.f32.xlu0 %v157
    %v159 = vpop.xlane.xlu0 %158
    %v160 = vrcp.pop 32.0
    %v161 = vmul.f32 %v159, %v160
    %v162 = vsub.f32 %v156, %v161
    %v163 = vmul.f32 %v162, %v162
    %v164 = vsel %vm78, %v163, 0.0
    %165 = vadd.xlane.f32.xlu0 %v164
    %v166 = vpop.xlane.xlu0 %165
    %v167 = vmul.f32 %v166, %v160
    %v168 = vadd.f32 %v167, 1e-12
    %v169 = vrsqrt.pop %v168
    %v170 = vmul.f32 %v162, %v169
    %v171 = vld [vmem:[%s3] sm:$0x1]
    %v173 = vlaneseq
    %v174 = vshrl.u32 %v173, 7
    %v175 = vsub.s32 0, %v174
    %v176 = vrot.slane %v171, %v175
    %v178 = vmul.f32 %v170, %v176
    %v179 = vld [vmem:[%s4] sm:$0x1]
    %v181 = vlaneseq
    %v182 = vshrl.u32 %v181, 7
    %v183 = vsub.s32 0, %v182
    %v184 = vrot.slane %v179, %v183
    %v186 = vadd.f32 %v178, %v184
    %v187 = vld [vmem:[#allocation7] sm:$0xff]
    %v188 = vld [vmem:[#allocation7 + $0x8] sm:$0xff]
    %v189 = vld [vmem:[#allocation7 + $0x10] sm:$0xff]
    %v190 = vld [vmem:[#allocation7 + $0x18] sm:$0xff]
    %v191 = vld [vmem:[%s6] sm:$0x1]
    %v193 = vlaneseq
    %v194 = vshrl.u32 %v193, 7
    %v195 = vsub.s32 0, %v194
    %v196 = vrot.slane %v191, %v195
    %v199 = vsel %vm78, %v186, 0
    %201 = vmatprep.subr.mxu0 0.0
    %202 = vmatpush1.msra.mxu0 %v187
    %203 = vmatprep.subr.mxu0 0.0
    %204 = vmatpush1.msra.mxu0 %v188
    %205 = vmatprep.subr.mxu0 0.0
    %206 = vmatpush1.msra.mxu0 %v189
    %207 = vmatprep.subr.mxu0 0.0
    %208 = vmatpush1.msra.mxu0 %v190
    %209 = vmatprep.subr.mxu0 0.0
    %210 = vmatpush1.msra.mxu0 0.0
    %211 = vmatprep.subr.mxu0 0.0
    %212 = vmatpush1.msra.mxu0 0.0
    %213 = vmatprep.subr.mxu0 0.0
    %214 = vmatpush1.msra.mxu0 0.0
    %215 = vmatprep.subr.mxu0 0.0
    %216 = vmatpush1.msra.mxu0 0.0
    %217 = vmatprep.subr.mxu0 0.0
    %218 = vmatpush1.msra.mxu0 0.0
    %219 = vmatprep.subr.mxu0 0.0
    %220 = vmatpush1.msra.mxu0 0.0
    %221 = vmatprep.subr.mxu0 0.0
    %222 = vmatpush1.msra.mxu0 0.0
    %223 = vmatprep.subr.mxu0 0.0
    %224 = vmatpush1.msra.mxu0 0.0
    %225 = vmatprep.subr.mxu0 0.0
    %226 = vmatpush1.msra.mxu0 0.0
    %227 = vmatprep.subr.mxu0 0.0
    %228 = vmatpush1.msra.mxu0 0.0
    %229 = vmatprep.subr.mxu0 0.0
    %230 = vmatpush1.msra.mxu0 0.0
    %231 = vmatprep.subr.mxu0 0.0
    %232 = vmatpush1.msra.mxu0 0.0
    %233 = vmatprep.subr.mxu0 0.0
    %234 = vmatpush1.msra.mxu0 0.0
    %235 = vmatprep.subr.mxu0 0.0
    %236 = vmatpush1.msra.mxu0 0.0
    %237 = vmatprep.subr.mxu0 0.0
    %238 = vmatpush1.msra.mxu0 0.0
    %239 = vmatprep.subr.mxu0 0.0
    %240 = vmatpush1.msra.mxu0 0.0
    %241 = vmatprep.subr.mxu0 0.0
    %242 = vmatpush1.msra.mxu0 0.0
    %243 = vmatprep.subr.mxu0 0.0
    %244 = vmatpush1.msra.mxu0 0.0
    %245 = vmatprep.subr.mxu0 0.0
    %246 = vmatpush1.msra.mxu0 0.0
    %247 = vmatprep.subr.mxu0 0.0
    %248 = vmatpush1.msra.mxu0 0.0
    %249 = vmatprep.subr.mxu0 0.0
    %250 = vmatpush1.msra.mxu0 0.0
    %251 = vmatprep.subr.mxu0 0.0
    %252 = vmatpush1.msra.mxu0 0.0
    %253 = vmatprep.subr.mxu0 0.0
    %254 = vmatpush1.msra.mxu0 0.0
    %255 = vmatprep.subr.mxu0 0.0
    %256 = vmatpush1.msra.mxu0 0.0
    %257 = vmatprep.subr.mxu0 0.0
    %258 = vmatpush1.msra.mxu0 0.0
    %259 = vmatprep.subr.mxu0 0.0
    %260 = vmatpush1.msra.mxu0 0.0
    %261 = vmatprep.subr.mxu0 0.0
    %262 = vmatpush1.msra.mxu0 0.0
    %263 = vmatprep.subr.mxu0 0.0
    %264 = vmatpush1.msra.mxu0 0.0
    %265 = vmatprep.mubr.f32.mxu0 0.0
    %266 = vmatmul.mubr.f32.gmra.mrb[0].mxu0 %v199
    %v267 = vpop.f32.mrb[0].mxu0
    %v268 = vadd.f32 %v196, %v267
    %v269 = vpop.f32.mrb[0].mxu0
    %270 = vdwg.mxu0
    %271 = vst [vmem:[#allocation8] sm:$0xff] %v268
    // Predicated region
    $region42: #{tpu_custom_call.1} parent=1 // pred_check
      _
    $region43: #{tpu_custom_call.1} parent=1 // pred_check_branch
      %273 = sbr.rel (0) target = $region45
    $region44: #{tpu_custom_call.1} parent=1 // pred_region
      %s275 = ssub.s32 128, 128
      %276 = vsyncadd [#allocation4], %s275
      %s278 = sshll.u32 [#allocation8], 4
      %s279 = int_to_ptr.vmem [resolvable:$true] %s278
      %281 = dma.vmem_to_hbm [thread:$0]  %s279, 128, %s7, [#allocation4]
    $region45: #{tpu_custom_call.1} parent=1 // pred_fallthru
      _
    // Predicated region
    $region46: #{tpu_custom_call.1} parent=1 // pred_check
      _
    $region47: #{tpu_custom_call.1} parent=1 // pred_check_branch
      %283 = sbr.rel (0) target = $region49
    $region48: #{tpu_custom_call.1} parent=1 // pred_region
      %284 = dma.done [#allocation4], 128
    $region49: #{tpu_custom_call.1} parent=1 // pred_fallthru
      _
    %285 = vsyncpa [#allocation3], 1
    %286 = vsyncpa [#allocation6], 1
    %287 = vsyncpa [#allocation4], 1

</llo_original>
